<compile_context>
chip_gen: v7x
topology: tpu7x:2x2x1
jax: 0.10.0
libtpu: 0.0.40
codegen_flags: <defaults>
</compile_context>

<pallas_src>
import jax
import jax.numpy as jnp
from jax.experimental import pallas as pl
from jax.experimental.pallas import tpu as pltpu

EPS = 1e-5


def _bn_scale_shift(h, gamma, beta):
    """One-pass BatchNorm (training-mode) as a per-feature scale/shift.

    h: [N, F] f32, gamma/beta: [1, F] f32.  Returns scale, shift ([1, F] each)
    so callers can fuse the affine apply with ReLU.
    """
    inv_n = 1.0 / h.shape[0]                       # static
    mean = jnp.sum(h, axis=0, keepdims=True) * inv_n
    mean_sq = jnp.sum(h * h, axis=0, keepdims=True) * inv_n
    var = mean_sq - mean * mean                    # biased variance
    scale = gamma * jax.lax.rsqrt(var + EPS)       # rsqrt -> EUP (free slot)
    shift = beta - mean * scale
    return scale, shift


def mlp3_kernel(x_ref,
                w1_ref, bn1_ref,
                w2_ref, bn2_ref,
                w3_ref, bn3_ref,
                o_ref):
    x = x_ref[...]

    # --- layer 1: Linear (no bias: cancelled by BN) -> BN -> ReLU (fused) ---
    h = jnp.dot(x, w1_ref[...], preferred_element_type=jnp.float32)
    s, t = _bn_scale_shift(h, bn1_ref[0:1, :], bn1_ref[1:2, :])
    h = jnp.maximum(h * s + t, 0.0)

    # --- layer 2: Linear -> BN -> ReLU (fused) ---
    h = jnp.dot(h.astype(w2_ref.dtype), w2_ref[...],
                preferred_element_type=jnp.float32)
    s, t = _bn_scale_shift(h, bn2_ref[0:1, :], bn2_ref[1:2, :])
    h = jnp.maximum(h * s + t, 0.0)

    # --- classifier: Linear -> BN -> LogSoftmax(dim=1) ---
    z = jnp.dot(h.astype(w3_ref.dtype), w3_ref[...],
                preferred_element_type=jnp.float32)
    s, t = _bn_scale_shift(z, bn3_ref[0:1, :], bn3_ref[1:2, :])
    z = z * s + t

    m = jnp.max(z, axis=1, keepdims=True)
    lse = m + jnp.log(jnp.sum(jnp.exp(z - m), axis=1, keepdims=True))
    o_ref[...] = z - lse


def _vmem_limit_bytes(n, in_f, h1, h2, out_f):
    # Activations (x, h1, h2, lane-padded logits) with 2x slack for temps,
    # plus weights + BN packs; floor at the 32 MiB scoped default, cap at
    # 64 MiB (v7x physical VMEM per TensorCore).
    act = n * (in_f + h1 + h2 + max(out_f, 128)) * 4 * 2
    wts = (in_f * h1 + h1 * h2 + h2 * out_f + 2 * (h1 + h2 + out_f)) * 4
    est = act + wts + (1 << 20)
    return int(min(max(est, 32 * 1024 * 1024), 64 * 1024 * 1024))


def mlp3_forward(x, params, *, matmul_dtype=jnp.float32):
    """x: any shape whose trailing dims flatten to in_features (NCHW ok).

    params follows the PyTorch module (biases included) but the kernel drops
    the Linear biases — BatchNorm's mean subtraction cancels them exactly.
    matmul_dtype=jnp.bfloat16 is an optional v6e/v7x MXU fast path (f32 accum,
    f32 BN/softmax math).
    """
    (w1, b1, g1, be1, w2, b2, g2, be2, w3, b3, g3, be3) = params
    del b1, b2, b3  # cancelled by BatchNorm mean subtraction

    in_features = w1.shape[0]
    h1, h2, out_features = w1.shape[1], w2.shape[1], w3.shape[1]

    xf = x.reshape(-1, in_features).astype(matmul_dtype)   # == x.view(-1, in_f)
    n = xf.shape[0]

    # Pack per-feature BN params: one [2, F] array per layer (row 0 = gamma,
    # row 1 = beta) -> fewer input DMAs than 6 separate (1, F) arrays.
    bn1 = jnp.stack([g1, be1]).astype(jnp.float32)
    bn2 = jnp.stack([g2, be2]).astype(jnp.float32)
    bn3 = jnp.stack([g3, be3]).astype(jnp.float32)

    args = (xf,
            w1.astype(matmul_dtype), bn1,
            w2.astype(matmul_dtype), bn2,
            w3.astype(matmul_dtype), bn3)

    vmem_spec = pl.BlockSpec(memory_space=pltpu.MemorySpace.VMEM)

    # NOTE: grid-less / fully-VMEM-resident by design (fastest at small N).
    # For very large N, tile N with a two-pass BN (stats accumulation pass +
    # apply pass) and mark the N axis "parallel" for megacore.
    return pl.pallas_call(
        mlp3_kernel,
        out_shape=jax.ShapeDtypeStruct((n, out_features), jnp.float32),
        in_specs=[vmem_spec] * len(args),
        out_specs=vmem_spec,
        compiler_params=pltpu.CompilerParams(
            vmem_limit_bytes=_vmem_limit_bytes(n, in_features, h1, h2,
                                               out_features)),
    )(*args)


def make_params(key, in_features, h1, h2, out_features):
    ks = jax.random.split(key, 12)
    # Linear weights stored pre-transposed as [in, out] (PyTorch is [out, in]).
    w1 = jax.random.normal(ks[0], (in_features, h1), jnp.float32) * 0.05
    b1 = jax.random.normal(ks[1], (h1,), jnp.float32) * 0.05
    w2 = jax.random.normal(ks[2], (h1, h2), jnp.float32) * 0.05
    b2 = jax.random.normal(ks[3], (h2,), jnp.float32) * 0.05
    w3 = jax.random.normal(ks[4], (h2, out_features), jnp.float32) * 0.05
    b3 = jax.random.normal(ks[5], (out_features,), jnp.float32) * 0.05
    # BatchNorm affine params (independent keys for gamma / beta).
    g1 = 1.0 + 0.1 * jax.random.normal(ks[6], (h1,), jnp.float32)
    be1 = 0.1 * jax.random.normal(ks[7], (h1,), jnp.float32)
    g2 = 1.0 + 0.1 * jax.random.normal(ks[8], (h2,), jnp.float32)
    be2 = 0.1 * jax.random.normal(ks[9], (h2,), jnp.float32)
    g3 = 1.0 + 0.1 * jax.random.normal(ks[10], (out_features,), jnp.float32)
    be3 = 0.1 * jax.random.normal(ks[11], (out_features,), jnp.float32)
    return (w1, b1, g1, be1, w2, b2, g2, be2, w3, b3, g3, be3)


def _bn_ref(h, gamma, beta):
    # Two-pass, bias-included reference (exactly PyTorch training-mode BN).
    mean = jnp.mean(h, axis=0, keepdims=True)
    var = jnp.mean((h - mean) * (h - mean), axis=0, keepdims=True)
    return (h - mean) * jax.lax.rsqrt(var + EPS) * gamma + beta


def mlp3_reference(x, params):
    (w1, b1, g1, be1, w2, b2, g2, be2, w3, b3, g3, be3) = params
    xf = x.reshape(-1, w1.shape[0]).astype(jnp.float32)
    h = xf @ w1 + b1
    h = jnp.maximum(_bn_ref(h, g1, be1), 0.0)
    h = h @ w2 + b2
    h = jnp.maximum(_bn_ref(h, g2, be2), 0.0)
    z = h @ w3 + b3
    z = _bn_ref(z, g3, be3)
    return jax.nn.log_softmax(z, axis=1)


if __name__ == "__main__":
    key = jax.random.PRNGKey(0)
    k_x, k_p = jax.random.split(key)

    # Small shapes consistent with the module: in_features = 1*16*8 = 128.
    batch, in_features, h1, h2, out_features = 8, 128, 256, 256, 10
    x = jax.random.normal(k_x, (batch, 1, 16, 8), jnp.float32)   # NCHW-style input

    params = make_params(k_p, in_features, h1, h2, out_features)

    out = mlp3_forward(x, params)                 # f32 matmuls (default)
    out = jax.block_until_ready(out)

    ref = mlp3_reference(x, params)               # includes the Linear biases
    assert out.shape == (batch, out_features)
    assert jnp.allclose(out, ref, atol=1e-4, rtol=1e-4), "mismatch vs JAX reference"
    print("KERNEL_OK")
</pallas_src>

<mosaic_0001>
module attributes {stable_mosaic.version = 11 : i64} {
  func.func @mlp3_kernel(%arg0: memref<8x128xf32, #tpu.memory_space<vmem>>, %arg1: memref<128x256xf32, #tpu.memory_space<vmem>>, %arg2: memref<2x256xf32, #tpu.memory_space<vmem>>, %arg3: memref<256x256xf32, #tpu.memory_space<vmem>>, %arg4: memref<2x256xf32, #tpu.memory_space<vmem>>, %arg5: memref<256x10xf32, #tpu.memory_space<vmem>>, %arg6: memref<2x10xf32, #tpu.memory_space<vmem>>, %arg7: memref<8x10xf32, #tpu.memory_space<vmem>>) attributes {dimension_semantics = [], scalar_prefetch = 0 : i64, scratch_operands = 0 : i64, tpu.core_type = #tpu.core_type<tc>} {
    %c0 = arith.constant 0 : index
    %c0_0 = arith.constant 0 : index
    %0 = vector.load %arg0[%c0, %c0_0] : memref<8x128xf32, #tpu.memory_space<vmem>>, vector<8x128xf32>
    %c0_1 = arith.constant 0 : index
    %c0_2 = arith.constant 0 : index
    %1 = vector.load %arg1[%c0_1, %c0_2] : memref<128x256xf32, #tpu.memory_space<vmem>>, vector<128x256xf32>
    %cst = arith.constant dense<0.000000e+00> : vector<8x256xf32>
    %2 = tpu.matmul %0, %1, %cst {dimension_numbers = #tpu.dot_dimension_numbers<[1], [0], [0], [1], [0, 0, 1, 1], [], []>} : vector<8x128xf32>, vector<128x256xf32>, vector<8x256xf32> -> vector<8x256xf32>
    %c0_3 = arith.constant 0 : index
    %c0_4 = arith.constant 0 : index
    %3 = vector.load %arg2[%c0_3, %c0_4] : memref<2x256xf32, #tpu.memory_space<vmem>>, vector<1x256xf32>
    %c1 = arith.constant 1 : index
    %c0_5 = arith.constant 0 : index
    %4 = vector.load %arg2[%c1, %c0_5] : memref<2x256xf32, #tpu.memory_space<vmem>>, vector<1x256xf32>
    %cst_6 = arith.constant dense<0.000000e+00> : vector<256xf32>
    %5 = vector.multi_reduction <add>, %2, %cst_6 [0] : vector<8x256xf32> to vector<256xf32>
    %6 = vector.shape_cast %5 : vector<256xf32> to vector<1x256xf32>
    %cst_7 = arith.constant 1.250000e-01 : f32
    %7 = vector.broadcast %cst_7 : f32 to vector<1x256xf32>
    %8 = arith.mulf %6, %7 : vector<1x256xf32>
    %9 = arith.mulf %2, %2 : vector<8x256xf32>
    %cst_8 = arith.constant dense<0.000000e+00> : vector<256xf32>
    %10 = vector.multi_reduction <add>, %9, %cst_8 [0] : vector<8x256xf32> to vector<256xf32>
    %11 = vector.shape_cast %10 : vector<256xf32> to vector<1x256xf32>
    %cst_9 = arith.constant 1.250000e-01 : f32
    %12 = vector.broadcast %cst_9 : f32 to vector<1x256xf32>
    %13 = arith.mulf %11, %12 : vector<1x256xf32>
    %14 = arith.mulf %8, %8 : vector<1x256xf32>
    %15 = arith.subf %13, %14 : vector<1x256xf32>
    %cst_10 = arith.constant 9.99999974E-6 : f32
    %16 = vector.broadcast %cst_10 : f32 to vector<1x256xf32>
    %17 = arith.addf %15, %16 : vector<1x256xf32>
    %18 = math.rsqrt %17 : vector<1x256xf32>
    %19 = arith.mulf %3, %18 : vector<1x256xf32>
    %20 = arith.mulf %8, %19 : vector<1x256xf32>
    %21 = arith.subf %4, %20 : vector<1x256xf32>
    %22 = vector.broadcast %19 : vector<1x256xf32> to vector<8x256xf32>
    %23 = arith.mulf %2, %22 : vector<8x256xf32>
    %24 = vector.broadcast %21 : vector<1x256xf32> to vector<8x256xf32>
    %25 = arith.addf %23, %24 : vector<8x256xf32>
    %cst_11 = arith.constant 0.000000e+00 : f32
    %26 = vector.broadcast %cst_11 : f32 to vector<8x256xf32>
    %27 = arith.maximumf %25, %26 : vector<8x256xf32>
    %c0_12 = arith.constant 0 : index
    %c0_13 = arith.constant 0 : index
    %28 = vector.load %arg3[%c0_12, %c0_13] : memref<256x256xf32, #tpu.memory_space<vmem>>, vector<256x256xf32>
    %cst_14 = arith.constant dense<0.000000e+00> : vector<8x256xf32>
    %29 = tpu.matmul %27, %28, %cst_14 {dimension_numbers = #tpu.dot_dimension_numbers<[1], [0], [0], [1], [0, 0, 1, 1], [], []>} : vector<8x256xf32>, vector<256x256xf32>, vector<8x256xf32> -> vector<8x256xf32>
    %c0_15 = arith.constant 0 : index
    %c0_16 = arith.constant 0 : index
    %30 = vector.load %arg4[%c0_15, %c0_16] : memref<2x256xf32, #tpu.memory_space<vmem>>, vector<1x256xf32>
    %c1_17 = arith.constant 1 : index
    %c0_18 = arith.constant 0 : index
    %31 = vector.load %arg4[%c1_17, %c0_18] : memref<2x256xf32, #tpu.memory_space<vmem>>, vector<1x256xf32>
    %cst_19 = arith.constant dense<0.000000e+00> : vector<256xf32>
    %32 = vector.multi_reduction <add>, %29, %cst_19 [0] : vector<8x256xf32> to vector<256xf32>
    %33 = vector.shape_cast %32 : vector<256xf32> to vector<1x256xf32>
    %cst_20 = arith.constant 1.250000e-01 : f32
    %34 = vector.broadcast %cst_20 : f32 to vector<1x256xf32>
    %35 = arith.mulf %33, %34 : vector<1x256xf32>
    %36 = arith.mulf %29, %29 : vector<8x256xf32>
    %cst_21 = arith.constant dense<0.000000e+00> : vector<256xf32>
    %37 = vector.multi_reduction <add>, %36, %cst_21 [0] : vector<8x256xf32> to vector<256xf32>
    %38 = vector.shape_cast %37 : vector<256xf32> to vector<1x256xf32>
    %cst_22 = arith.constant 1.250000e-01 : f32
    %39 = vector.broadcast %cst_22 : f32 to vector<1x256xf32>
    %40 = arith.mulf %38, %39 : vector<1x256xf32>
    %41 = arith.mulf %35, %35 : vector<1x256xf32>
    %42 = arith.subf %40, %41 : vector<1x256xf32>
    %cst_23 = arith.constant 9.99999974E-6 : f32
    %43 = vector.broadcast %cst_23 : f32 to vector<1x256xf32>
    %44 = arith.addf %42, %43 : vector<1x256xf32>
    %45 = math.rsqrt %44 : vector<1x256xf32>
    %46 = arith.mulf %30, %45 : vector<1x256xf32>
    %47 = arith.mulf %35, %46 : vector<1x256xf32>
    %48 = arith.subf %31, %47 : vector<1x256xf32>
    %49 = vector.broadcast %46 : vector<1x256xf32> to vector<8x256xf32>
    %50 = arith.mulf %29, %49 : vector<8x256xf32>
    %51 = vector.broadcast %48 : vector<1x256xf32> to vector<8x256xf32>
    %52 = arith.addf %50, %51 : vector<8x256xf32>
    %cst_24 = arith.constant 0.000000e+00 : f32
    %53 = vector.broadcast %cst_24 : f32 to vector<8x256xf32>
    %54 = arith.maximumf %52, %53 : vector<8x256xf32>
    %c0_25 = arith.constant 0 : index
    %c0_26 = arith.constant 0 : index
    %55 = vector.load %arg5[%c0_25, %c0_26] : memref<256x10xf32, #tpu.memory_space<vmem>>, vector<256x10xf32>
    %cst_27 = arith.constant dense<0.000000e+00> : vector<8x10xf32>
    %56 = tpu.matmul %54, %55, %cst_27 {dimension_numbers = #tpu.dot_dimension_numbers<[1], [0], [0], [1], [0, 0, 1, 1], [], []>} : vector<8x256xf32>, vector<256x10xf32>, vector<8x10xf32> -> vector<8x10xf32>
    %c0_28 = arith.constant 0 : index
    %c0_29 = arith.constant 0 : index
    %57 = vector.load %arg6[%c0_28, %c0_29] : memref<2x10xf32, #tpu.memory_space<vmem>>, vector<1x10xf32>
    %c1_30 = arith.constant 1 : index
    %c0_31 = arith.constant 0 : index
    %58 = vector.load %arg6[%c1_30, %c0_31] : memref<2x10xf32, #tpu.memory_space<vmem>>, vector<1x10xf32>
    %cst_32 = arith.constant dense<0.000000e+00> : vector<10xf32>
    %59 = vector.multi_reduction <add>, %56, %cst_32 [0] : vector<8x10xf32> to vector<10xf32>
    %60 = vector.shape_cast %59 : vector<10xf32> to vector<1x10xf32>
    %cst_33 = arith.constant 1.250000e-01 : f32
    %61 = vector.broadcast %cst_33 : f32 to vector<1x10xf32>
    %62 = arith.mulf %60, %61 : vector<1x10xf32>
    %63 = arith.mulf %56, %56 : vector<8x10xf32>
    %cst_34 = arith.constant dense<0.000000e+00> : vector<10xf32>
    %64 = vector.multi_reduction <add>, %63, %cst_34 [0] : vector<8x10xf32> to vector<10xf32>
    %65 = vector.shape_cast %64 : vector<10xf32> to vector<1x10xf32>
    %cst_35 = arith.constant 1.250000e-01 : f32
    %66 = vector.broadcast %cst_35 : f32 to vector<1x10xf32>
    %67 = arith.mulf %65, %66 : vector<1x10xf32>
    %68 = arith.mulf %62, %62 : vector<1x10xf32>
    %69 = arith.subf %67, %68 : vector<1x10xf32>
    %cst_36 = arith.constant 9.99999974E-6 : f32
    %70 = vector.broadcast %cst_36 : f32 to vector<1x10xf32>
    %71 = arith.addf %69, %70 : vector<1x10xf32>
    %72 = math.rsqrt %71 : vector<1x10xf32>
    %73 = arith.mulf %57, %72 : vector<1x10xf32>
    %74 = arith.mulf %62, %73 : vector<1x10xf32>
    %75 = arith.subf %58, %74 : vector<1x10xf32>
    %76 = vector.broadcast %73 : vector<1x10xf32> to vector<8x10xf32>
    %77 = arith.mulf %56, %76 : vector<8x10xf32>
    %78 = vector.broadcast %75 : vector<1x10xf32> to vector<8x10xf32>
    %79 = arith.addf %77, %78 : vector<8x10xf32>
    %cst_37 = arith.constant dense<0xFF800000> : vector<8xf32>
    %80 = vector.multi_reduction <maximumf>, %79, %cst_37 [1] : vector<8x10xf32> to vector<8xf32>
    %81 = vector.shape_cast %80 : vector<8xf32> to vector<8x1xf32>
    %82 = vector.broadcast %81 : vector<8x1xf32> to vector<8x10xf32>
    %83 = arith.subf %79, %82 : vector<8x10xf32>
    %84 = math.exp %83 : vector<8x10xf32>
    %cst_38 = arith.constant dense<0.000000e+00> : vector<8xf32>
    %85 = vector.multi_reduction <add>, %84, %cst_38 [1] : vector<8x10xf32> to vector<8xf32>
    %86 = vector.shape_cast %85 : vector<8xf32> to vector<8x1xf32>
    %87 = math.log %86 : vector<8x1xf32>
    %88 = arith.addf %81, %87 : vector<8x1xf32>
    %89 = vector.broadcast %88 : vector<8x1xf32> to vector<8x10xf32>
    %90 = arith.subf %79, %89 : vector<8x10xf32>
    %c0_39 = arith.constant 0 : index
    %c0_40 = arith.constant 0 : index
    %91 = vector.load %arg7[%c0_39, %c0_40] : memref<8x10xf32, #tpu.memory_space<vmem>>, vector<8x10xf32>
    tpu.vector_store %arg7[%c0_39, %c0_40], %90 {strides = array<i32>} : memref<8x10xf32, #tpu.memory_space<vmem>>, vector<8x10xf32>,
    return
  }
}

</mosaic_0001>

<llo_original>
// kernel: tpu_custom_call.1
$region0: #{tpu_custom_call.1}
  #allocation0 [shape = 'u32[]', space=smem, size = 0x4, offset = 0x4, fixed_abs, tag = 'smem constant byte address 0x4 - core index']
  #allocation1 [shape = 'u32[144,128]{1,0:T(1,128)}', space=vmem, size = 0x12000, scoped, tag = 'internal scratch']
  %s0 = inlined_call_operand.vmem [shape: f32[8,128], index: 0, kind: input, shape index: {}]
  %s1 = inlined_call_operand.vmem [shape: f32[128,256], index: 1, kind: input, shape index: {}]
  %s2 = inlined_call_operand.vmem [shape: f32[2,256], index: 2, kind: input, shape index: {}]
  %s3 = inlined_call_operand.hbm [shape: f32[256,256], index: 3, kind: input, shape index: {}]
  %s4 = inlined_call_operand.vmem [shape: f32[2,256], index: 4, kind: input, shape index: {}]
  %s5 = inlined_call_operand.vmem [shape: f32[256,10], index: 5, kind: input, shape index: {}]
  %s6 = inlined_call_operand.vmem [shape: f32[2,10], index: 6, kind: input, shape index: {}]
  %s7 = inlined_call_operand.hbm [shape: f32[8,10], index: 7, kind: output, shape index: {}]
  %s8 = sld [smem:[#allocation0]]
  $region42: #{tpu_custom_call.1} parent=0
    _
  %s10 = ssub.s32 1, %s8
  %s11 = scalar_select 0, %s10, %s8
  $region1: #{tpu_custom_call.1} parent=0
    #allocation2 [shape = 'u8[262144]{0}', space=vmem, size = 0x40000, scoped, tag = 'input window, operand 3, single buffered']
    #allocation3 [shape = 's32[1]{0}', space=sflag, size = 0x4, scoped, tag = 'scoped memory for tpu_custom_call.1']
    #allocation4 [shape = 's32[1]{0}', space=sflag, size = 0x4, scoped, tag = 'scoped memory for tpu_custom_call.1']
    #allocation5 [shape = 'u8[4096]{0}', space=vmem, size = 0x1000, scoped, tag = 'output window, operand 0, single buffered']
    %12 = vsyncpa [#allocation3], 0
    %13 = vsyncpa [#allocation4], 0
    // Predicated region
    $region2: #{tpu_custom_call.1} parent=1 // pred_check
      _
    $region3: #{tpu_custom_call.1} parent=1 // pred_check_branch
      %15 = sbr.rel (0) target = $region5
    $region4: #{tpu_custom_call.1} parent=1 // pred_region
      _
    $region5: #{tpu_custom_call.1} parent=1 // pred_fallthru
      _
    // Predicated region
    $region6: #{tpu_custom_call.1} parent=1 // pred_check
      _
    $region7: #{tpu_custom_call.1} parent=1 // pred_check_branch
      %17 = sbr.rel (0) target = $region9
    $region8: #{tpu_custom_call.1} parent=1 // pred_region
      _
    $region9: #{tpu_custom_call.1} parent=1 // pred_fallthru
      _
    // Predicated region
    $region10: #{tpu_custom_call.1} parent=1 // pred_check
      _
    $region11: #{tpu_custom_call.1} parent=1 // pred_check_branch
      %19 = sbr.rel (0) target = $region13
    $region12: #{tpu_custom_call.1} parent=1 // pred_region
      _
    $region13: #{tpu_custom_call.1} parent=1 // pred_fallthru
      _
    // Predicated region
    $region14: #{tpu_custom_call.1} parent=1 // pred_check
      _
    $region15: #{tpu_custom_call.1} parent=1 // pred_check_branch
      %21 = sbr.rel (0) target = $region17
    $region16: #{tpu_custom_call.1} parent=1 // pred_region
      %s23 = ssub.s32 8192, 8192
      %24 = vsyncadd [#allocation3], %s23
      %s25 = sshll.u32 [#allocation2], 4
      %s26 = int_to_ptr.vmem [resolvable:$true] %s25
      %31 = dma.hbm_to_vmem [thread:$0]  %s3, 8192, %s26, [#allocation3], 256, 256, 16
    $region17: #{tpu_custom_call.1} parent=1 // pred_fallthru
      _
    // Predicated region
    $region18: #{tpu_custom_call.1} parent=1 // pred_check
      _
    $region19: #{tpu_custom_call.1} parent=1 // pred_check_branch
      %33 = sbr.rel (0) target = $region21
    $region20: #{tpu_custom_call.1} parent=1 // pred_region
      _
    $region21: #{tpu_custom_call.1} parent=1 // pred_fallthru
      _
    // Predicated region
    $region22: #{tpu_custom_call.1} parent=1 // pred_check
      _
    $region23: #{tpu_custom_call.1} parent=1 // pred_check_branch
      %35 = sbr.rel (0) target = $region25
    $region24: #{tpu_custom_call.1} parent=1 // pred_region
      _
    $region25: #{tpu_custom_call.1} parent=1 // pred_fallthru
      _
    // Predicated region
    $region26: #{tpu_custom_call.1} parent=1 // pred_check
      _
    $region27: #{tpu_custom_call.1} parent=1 // pred_check_branch
      %37 = sbr.rel (0) target = $region29
    $region28: #{tpu_custom_call.1} parent=1 // pred_region
      _
    $region29: #{tpu_custom_call.1} parent=1 // pred_fallthru
      _
    // Predicated region
    $region30: #{tpu_custom_call.1} parent=1 // pred_check
      _
    $region31: #{tpu_custom_call.1} parent=1 // pred_check_branch
      %39 = sbr.rel (0) target = $region33
    $region32: #{tpu_custom_call.1} parent=1 // pred_region
      %40 = dma.done [#allocation3], 8192
    $region33: #{tpu_custom_call.1} parent=1 // pred_fallthru
      _
    %v41 = vld [vmem:[%s0] sm:$0xff]
    %v42 = vld [vmem:[%s1] sm:$0xff]
    %v43 = vld [vmem:[%s1 + $0x8] sm:$0xff]
    %v44 = vld [vmem:[%s1 + $0x10] sm:$0xff]
    %v45 = vld [vmem:[%s1 + $0x18] sm:$0xff]
    %v46 = vld [vmem:[%s1 + $0x20] sm:$0xff]
    %v47 = vld [vmem:[%s1 + $0x28] sm:$0xff]
    %v48 = vld [vmem:[%s1 + $0x30] sm:$0xff]
    %v49 = vld [vmem:[%s1 + $0x38] sm:$0xff]
    %v50 = vld [vmem:[%s1 + $0x40] sm:$0xff]
    %v51 = vld [vmem:[%s1 + $0x48] sm:$0xff]
    %v52 = vld [vmem:[%s1 + $0x50] sm:$0xff]
    %v53 = vld [vmem:[%s1 + $0x58] sm:$0xff]
    %v54 = vld [vmem:[%s1 + $0x60] sm:$0xff]
    %v55 = vld [vmem:[%s1 + $0x68] sm:$0xff]
    %v56 = vld [vmem:[%s1 + $0x70] sm:$0xff]
    %v57 = vld [vmem:[%s1 + $0x78] sm:$0xff]
    %v58 = vld [vmem:[%s1 + $0x80] sm:$0xff]
    %v59 = vld [vmem:[%s1 + $0x88] sm:$0xff]
    %v60 = vld [vmem:[%s1 + $0x90] sm:$0xff]
    %v61 = vld [vmem:[%s1 + $0x98] sm:$0xff]
    %v62 = vld [vmem:[%s1 + $0xa0] sm:$0xff]
    %v63 = vld [vmem:[%s1 + $0xa8] sm:$0xff]
    %v64 = vld [vmem:[%s1 + $0xb0] sm:$0xff]
    %v65 = vld [vmem:[%s1 + $0xb8] sm:$0xff]
    %v66 = vld [vmem:[%s1 + $0xc0] sm:$0xff]
    %v67 = vld [vmem:[%s1 + $0xc8] sm:$0xff]
    %v68 = vld [vmem:[%s1 + $0xd0] sm:$0xff]
    %v69 = vld [vmem:[%s1 + $0xd8] sm:$0xff]
    %v70 = vld [vmem:[%s1 + $0xe0] sm:$0xff]
    %v71 = vld [vmem:[%s1 + $0xe8] sm:$0xff]
    %v72 = vld [vmem:[%s1 + $0xf0] sm:$0xff]
    %v73 = vld [vmem:[%s1 + $0xf8] sm:$0xff]
    %74 = vmatprep.subr.mxu0 %v43
    %75 = vmatpush1.msra.mxu0 %v42
    %76 = vmatprep.subr.mxu0 %v45
    %77 = vmatpush1.msra.mxu0 %v44
    %78 = vmatprep.subr.mxu0 %v47
    %79 = vmatpush1.msra.mxu0 %v46
    %80 = vmatprep.subr.mxu0 %v49
    %81 = vmatpush1.msra.mxu0 %v48
    %82 = vmatprep.subr.mxu0 %v51
    %83 = vmatpush1.msra.mxu0 %v50
    %84 = vmatprep.subr.mxu0 %v53
    %85 = vmatpush1.msra.mxu0 %v52
    %86 = vmatprep.subr.mxu0 %v55
    %87 = vmatpush1.msra.mxu0 %v54
    %88 = vmatprep.subr.mxu0 %v57
    %89 = vmatpush1.msra.mxu0 %v56
    %90 = vmatprep.subr.mxu0 %v59
    %91 = vmatpush1.msra.mxu0 %v58
    %92 = vmatprep.subr.mxu0 %v61
    %93 = vmatpush1.msra.mxu0 %v60
    %94 = vmatprep.subr.mxu0 %v63
    %95 = vmatpush1.msra.mxu0 %v62
    %96 = vmatprep.subr.mxu0 %v65
    %97 = vmatpush1.msra.mxu0 %v64
    %98 = vmatprep.subr.mxu0 %v67
    %99 = vmatpush1.msra.mxu0 %v66
    %100 = vmatprep.subr.mxu0 %v69
    %101 = vmatpush1.msra.mxu0 %v68
    %102 = vmatprep.subr.mxu0 %v71
    %103 = vmatpush1.msra.mxu0 %v70
    %104 = vmatprep.subr.mxu0 %v73
    %105 = vmatpush1.msra.mxu0 %v72
    %106 = vmatprep.subr.mxu0 0.0
    %107 = vmatpush1.msra.mxu0 0.0
    %108 = vmatprep.subr.mxu0 0.0
    %109 = vmatpush1.msra.mxu0 0.0
    %110 = vmatprep.subr.mxu0 0.0
    %111 = vmatpush1.msra.mxu0 0.0
    %112 = vmatprep.subr.mxu0 0.0
    %113 = vmatpush1.msra.mxu0 0.0
    %114 = vmatprep.subr.mxu0 0.0
    %115 = vmatpush1.msra.mxu0 0.0
    %116 = vmatprep.subr.mxu0 0.0
    %117 = vmatpush1.msra.mxu0 0.0
    %118 = vmatprep.subr.mxu0 0.0
    %119 = vmatpush1.msra.mxu0 0.0
    %120 = vmatprep.subr.mxu0 0.0
    %121 = vmatpush1.msra.mxu0 0.0
    %122 = vmatprep.subr.mxu0 0.0
    %123 = vmatpush1.msra.mxu0 0.0
    %124 = vmatprep.subr.mxu0 0.0
    %125 = vmatpush1.msra.mxu0 0.0
    %126 = vmatprep.subr.mxu0 0.0
    %127 = vmatpush1.msra.mxu0 0.0
    %128 = vmatprep.subr.mxu0 0.0
    %129 = vmatpush1.msra.mxu0 0.0
    %130 = vmatprep.subr.mxu0 0.0
    %131 = vmatpush1.msra.mxu0 0.0
    %132 = vmatprep.subr.mxu0 0.0
    %133 = vmatpush1.msra.mxu0 0.0
    %134 = vmatprep.subr.mxu0 0.0
    %135 = vmatpush1.msra.mxu0 0.0
    %136 = vmatprep.subr.mxu0 0.0
    %137 = vmatpush1.msra.mxu0 0.0
    %138 = vmatprep.mubr.f32.mxu0 0.0
    %139 = vmatmul.mubr.f32.gmra.mrb[0].mxu0 %v41
    %v140 = vpop.f32.mrb[0].mxu0
    %v141 = vadd.f32 0.0, %v140
    %v142 = vpop.f32.mrb[0].mxu0
    %v143 = vadd.f32 0.0, %v142
    %144 = vdwg.mxu0
    %v145 = vld [vmem:[%s2] ss:$2 sm:$0x3]
    %s146 = scalar_lea.vmem %s2, 1
    %v147 = vld [vmem:[%s146] ss:$2 sm:$0x3]
    %v148 = vrot.slane %v141, 4
    %v149 = vadd.f32 %v141, %v148
    %v150 = vrot.slane %v149, 2
    %v151 = vadd.f32 %v149, %v150
    %v152 = vrot.slane %v151, 1
    %v153 = vadd.f32 %v151, %v152
    %v154 = vrot.slane %v143, 4
    %v155 = vadd.f32 %v143, %v154
    %v156 = vrot.slane %v155, 2
    %v157 = vadd.f32 %v155, %v156
    %v158 = vrot.slane %v157, 1
    %v159 = vadd.f32 %v157, %v158
    %v160 = vmul.f32 %v153, 0.125
    %v161 = vmul.f32 %v159, 0.125
    %v162 = vmul.f32 %v141, %v141
    %v163 = vmul.f32 %v143, %v143
    %v164 = vrot.slane %v162, 4
    %v165 = vadd.f32 %v162, %v164
    %v166 = vrot.slane %v165, 2
    %v167 = vadd.f32 %v165, %v166
    %v168 = vrot.slane %v167, 1
    %v169 = vadd.f32 %v167, %v168
    %v170 = vrot.slane %v163, 4
    %v171 = vadd.f32 %v163, %v170
    %v172 = vrot.slane %v171, 2
    %v173 = vadd.f32 %v171, %v172
    %v174 = vrot.slane %v173, 1
    %v175 = vadd.f32 %v173, %v174
    %v176 = vmul.f32 %v169, 0.125
    %v177 = vmul.f32 %v175, 0.125
    %v178 = vmul.f32 %v160, %v160
    %v179 = vmul.f32 %v161, %v161
    %v180 = vsub.f32 %v176, %v178
    %v181 = vsub.f32 %v177, %v179
    %v182 = vadd.f32 %v180, 1e-05
    %v183 = vadd.f32 %v181, 1e-05
    %v184 = vrsqrt.pop %v182
    %v185 = vrsqrt.pop %v183
    %v188 = vcombine.low %v184, %v185
    %v190 = vunpack.c.l.s4 1966171168
    %v191 = vunpack.c.0.s8 %v190
    %v192 = vlaneseq
    %v193 = vshrl.u32 %v192, 7
    %v194 = vsub.s32 %v191, %v193
    %v195 = vrot.slane %v188, %v194
    %v197 = vunpack.c.l.s4 1966171168
    %v198 = vunpack.c.0.s8 %v197
    %v199 = vlaneseq
    %v200 = vshrl.u32 %v199, 7
    %v201 = vsub.s32 %v198, %v200
    %v202 = vrot.slane %v195, %v201
    %v204 = vmul.f32 %v145, %v202
    %v206 = vlaneseq
    %v207 = vshrl.u32 %v206, 7
    %v208 = vsub.s32 0, %v207
    %v209 = vrot.slane %v204, %v208
    %v210 = vlaneseq
    %v211 = vshrl.u32 %v210, 7
    %v212 = vsub.s32 1, %v211
    %v213 = vrot.slane %v204, %v212
    %v216 = vmul.f32 %v160, %v209
    %v217 = vmul.f32 %v161, %v213
    %v220 = vcombine.low %v216, %v217
    %v222 = vunpack.c.l.s4 1966171168
    %v223 = vunpack.c.0.s8 %v222
    %v224 = vlaneseq
    %v225 = vshrl.u32 %v224, 7
    %v226 = vsub.s32 %v223, %v225
    %v227 = vrot.slane %v220, %v226
    %v229 = vunpack.c.l.s4 1966171168
    %v230 = vunpack.c.0.s8 %v229
    %v231 = vlaneseq
    %v232 = vshrl.u32 %v231, 7
    %v233 = vsub.s32 %v230, %v232
    %v234 = vrot.slane %v227, %v233
    %v236 = vsub.f32 %v147, %v234
    %v237 = vmul.f32 %v141, %v209
    %v238 = vmul.f32 %v143, %v213
    %v240 = vlaneseq
    %v241 = vshrl.u32 %v240, 7
    %v242 = vsub.s32 0, %v241
    %v243 = vrot.slane %v236, %v242
    %v244 = vlaneseq
    %v245 = vshrl.u32 %v244, 7
    %v246 = vsub.s32 1, %v245
    %v247 = vrot.slane %v236, %v246
    %v250 = vadd.f32 %v237, %v243
    %v251 = vadd.f32 %v238, %v247
    %v252 = vmax.f32 %v250, 0.0
    %v253 = vmax.f32 %v251, 0.0
    %v254 = vld [vmem:[#allocation2] sm:$0xff]
    %v255 = vld [vmem:[#allocation2 + $0x8] sm:$0xff]
    %v256 = vld [vmem:[#allocation2 + $0x10] sm:$0xff]
    %v257 = vld [vmem:[#allocation2 + $0x18] sm:$0xff]
    %v258 = vld [vmem:[#allocation2 + $0x20] sm:$0xff]
    %v259 = vld [vmem:[#allocation2 + $0x28] sm:$0xff]
    %v260 = vld [vmem:[#allocation2 + $0x30] sm:$0xff]
    %v261 = vld [vmem:[#allocation2 + $0x38] sm:$0xff]
    %v262 = vld [vmem:[#allocation2 + $0x40] sm:$0xff]
    %v263 = vld [vmem:[#allocation2 + $0x48] sm:$0xff]
    %v264 = vld [vmem:[#allocation2 + $0x50] sm:$0xff]
    %v265 = vld [vmem:[#allocation2 + $0x58] sm:$0xff]
    %v266 = vld [vmem:[#allocation2 + $0x60] sm:$0xff]
    %v267 = vld [vmem:[#allocation2 + $0x68] sm:$0xff]
    %v268 = vld [vmem:[#allocation2 + $0x70] sm:$0xff]
    %v269 = vld [vmem:[#allocation2 + $0x78] sm:$0xff]
    %v270 = vld [vmem:[#allocation2 + $0x80] sm:$0xff]
    %v271 = vld [vmem:[#allocation2 + $0x88] sm:$0xff]
    %v272 = vld [vmem:[#allocation2 + $0x90] sm:$0xff]
    %v273 = vld [vmem:[#allocation2 + $0x98] sm:$0xff]
    %v274 = vld [vmem:[#allocation2 + $0xa0] sm:$0xff]
    %v275 = vld [vmem:[#allocation2 + $0xa8] sm:$0xff]
    %v276 = vld [vmem:[#allocation2 + $0xb0] sm:$0xff]
    %v277 = vld [vmem:[#allocation2 + $0xb8] sm:$0xff]
    %v278 = vld [vmem:[#allocation2 + $0xc0] sm:$0xff]
    %v279 = vld [vmem:[#allocation2 + $0xc8] sm:$0xff]
    %v280 = vld [vmem:[#allocation2 + $0xd0] sm:$0xff]
    %v281 = vld [vmem:[#allocation2 + $0xd8] sm:$0xff]
    %v282 = vld [vmem:[#allocation2 + $0xe0] sm:$0xff]
    %v283 = vld [vmem:[#allocation2 + $0xe8] sm:$0xff]
    %v284 = vld [vmem:[#allocation2 + $0xf0] sm:$0xff]
    %v285 = vld [vmem:[#allocation2 + $0xf8] sm:$0xff]
    %v286 = vld [vmem:[#allocation2 + $0x100] sm:$0xff]
    %v287 = vld [vmem:[#allocation2 + $0x108] sm:$0xff]
    %v288 = vld [vmem:[#allocation2 + $0x110] sm:$0xff]
    %v289 = vld [vmem:[#allocation2 + $0x118] sm:$0xff]
    %v290 = vld [vmem:[#allocation2 + $0x120] sm:$0xff]
    %v291 = vld [vmem:[#allocation2 + $0x128] sm:$0xff]
    %v292 = vld [vmem:[#allocation2 + $0x130] sm:$0xff]
    %v293 = vld [vmem:[#allocation2 + $0x138] sm:$0xff]
    %v294 = vld [vmem:[#allocation2 + $0x140] sm:$0xff]
    %v295 = vld [vmem:[#allocation2 + $0x148] sm:$0xff]
    %v296 = vld [vmem:[#allocation2 + $0x150] sm:$0xff]
    %v297 = vld [vmem:[#allocation2 + $0x158] sm:$0xff]
    %v298 = vld [vmem:[#allocation2 + $0x160] sm:$0xff]
    %v299 = vld [vmem:[#allocation2 + $0x168] sm:$0xff]
    %v300 = vld [vmem:[#allocation2 + $0x170] sm:$0xff]
    %v301 = vld [vmem:[#allocation2 + $0x178] sm:$0xff]
    %v302 = vld [vmem:[#allocation2 + $0x180] sm:$0xff]
    %v303 = vld [vmem:[#allocation2 + $0x188] sm:$0xff]
    %v304 = vld [vmem:[#allocation2 + $0x190] sm:$0xff]
    %v305 = vld [vmem:[#allocation2 + $0x198] sm:$0xff]
    %v306 = vld [vmem:[#allocation2 + $0x1a0] sm:$0xff]
    %v307 = vld [vmem:[#allocation2 + $0x1a8] sm:$0xff]
    %v308 = vld [vmem:[#allocation2 + $0x1b0] sm:$0xff]
    %v309 = vld [vmem:[#allocation2 + $0x1b8] sm:$0xff]
    %v310 = vld [vmem:[#allocation2 + $0x1c0] sm:$0xff]
    %v311 = vld [vmem:[#allocation2 + $0x1c8] sm:$0xff]
    %v312 = vld [vmem:[#allocation2 + $0x1d0] sm:$0xff]
    %v313 = vld [vmem:[#allocation2 + $0x1d8] sm:$0xff]
    %v314 = vld [vmem:[#allocation2 + $0x1e0] sm:$0xff]
    %v315 = vld [vmem:[#allocation2 + $0x1e8] sm:$0xff]
    %v316 = vld [vmem:[#allocation2 + $0x1f0] sm:$0xff]
    %v317 = vld [vmem:[#allocation2 + $0x1f8] sm:$0xff]
    %318 = vmatprep.subr.mxu0 %v255
    %319 = vmatpush1.msra.mxu0 %v254
    %320 = vmatprep.subr.mxu0 %v257
    %321 = vmatpush1.msra.mxu0 %v256
    %322 = vmatprep.subr.mxu0 %v259
    %323 = vmatpush1.msra.mxu0 %v258
    %324 = vmatprep.subr.mxu0 %v261
    %325 = vmatpush1.msra.mxu0 %v260
    %326 = vmatprep.subr.mxu0 %v263
    %327 = vmatpush1.msra.mxu0 %v262
    %328 = vmatprep.subr.mxu0 %v265
    %329 = vmatpush1.msra.mxu0 %v264
    %330 = vmatprep.subr.mxu0 %v267
    %331 = vmatpush1.msra.mxu0 %v266
    %332 = vmatprep.subr.mxu0 %v269
    %333 = vmatpush1.msra.mxu0 %v268
    %334 = vmatprep.subr.mxu0 %v271
    %335 = vmatpush1.msra.mxu0 %v270
    %336 = vmatprep.subr.mxu0 %v273
    %337 = vmatpush1.msra.mxu0 %v272
    %338 = vmatprep.subr.mxu0 %v275
    %339 = vmatpush1.msra.mxu0 %v274
    %340 = vmatprep.subr.mxu0 %v277
    %341 = vmatpush1.msra.mxu0 %v276
    %342 = vmatprep.subr.mxu0 %v279
    %343 = vmatpush1.msra.mxu0 %v278
    %344 = vmatprep.subr.mxu0 %v281
    %345 = vmatpush1.msra.mxu0 %v280
    %346 = vmatprep.subr.mxu0 %v283
    %347 = vmatpush1.msra.mxu0 %v282
    %348 = vmatprep.subr.mxu0 %v285
    %349 = vmatpush1.msra.mxu0 %v284
    %350 = vmatprep.subr.mxu0 %v287
    %351 = vmatpush1.msra.mxu0 %v286
    %352 = vmatprep.subr.mxu0 %v289
    %353 = vmatpush1.msra.mxu0 %v288
    %354 = vmatprep.subr.mxu0 %v291
    %355 = vmatpush1.msra.mxu0 %v290
    %356 = vmatprep.subr.mxu0 %v293
    %357 = vmatpush1.msra.mxu0 %v292
    %358 = vmatprep.subr.mxu0 %v295
    %359 = vmatpush1.msra.mxu0 %v294
    %360 = vmatprep.subr.mxu0 %v297
    %361 = vmatpush1.msra.mxu0 %v296
    %362 = vmatprep.subr.mxu0 %v299
    %363 = vmatpush1.msra.mxu0 %v298
    %364 = vmatprep.subr.mxu0 %v301
    %365 = vmatpush1.msra.mxu0 %v300
    %366 = vmatprep.subr.mxu0 %v303
    %367 = vmatpush1.msra.mxu0 %v302
    %368 = vmatprep.subr.mxu0 %v305
    %369 = vmatpush1.msra.mxu0 %v304
    %370 = vmatprep.subr.mxu0 %v307
    %371 = vmatpush1.msra.mxu0 %v306
    %372 = vmatprep.subr.mxu0 %v309
    %373 = vmatpush1.msra.mxu0 %v308
    %374 = vmatprep.subr.mxu0 %v311
    %375 = vmatpush1.msra.mxu0 %v310
    %376 = vmatprep.subr.mxu0 %v313
    %377 = vmatpush1.msra.mxu0 %v312
    %378 = vmatprep.subr.mxu0 %v315
    %379 = vmatpush1.msra.mxu0 %v314
    %380 = vmatprep.subr.mxu0 %v317
    %381 = vmatpush1.msra.mxu0 %v316
    %382 = vmatprep.mubr.f32.mxu0 %v253
    %383 = vmatmul.mubr.f32.gmra.mrb[0].mxu0 %v252
    %v384 = vpop.f32.mrb[0].mxu0
    %v385 = vadd.f32 0.0, %v384
    %v386 = vpop.f32.mrb[0].mxu0
    %v387 = vadd.f32 0.0, %v386
    %388 = vdwg.mxu0
    %v389 = vld [vmem:[%s4] ss:$2 sm:$0x3]
    %s390 = scalar_lea.vmem %s4, 1
    %v391 = vld [vmem:[%s390] ss:$2 sm:$0x3]
    %v392 = vrot.slane %v385, 4
    %v393 = vadd.f32 %v385, %v392
    %v394 = vrot.slane %v393, 2
    %v395 = vadd.f32 %v393, %v394
    %v396 = vrot.slane %v395, 1
    %v397 = vadd.f32 %v395, %v396
    %v398 = vrot.slane %v387, 4
    %v399 = vadd.f32 %v387, %v398
    %v400 = vrot.slane %v399, 2
    %v401 = vadd.f32 %v399, %v400
    %v402 = vrot.slane %v401, 1
    %v403 = vadd.f32 %v401, %v402
    %v404 = vmul.f32 %v397, 0.125
    %v405 = vmul.f32 %v403, 0.125
    %v406 = vmul.f32 %v385, %v385
    %v407 = vmul.f32 %v387, %v387
    %v408 = vrot.slane %v406, 4
    %v409 = vadd.f32 %v406, %v408
    %v410 = vrot.slane %v409, 2
    %v411 = vadd.f32 %v409, %v410
    %v412 = vrot.slane %v411, 1
    %v413 = vadd.f32 %v411, %v412
    %v414 = vrot.slane %v407, 4
    %v415 = vadd.f32 %v407, %v414
    %v416 = vrot.slane %v415, 2
    %v417 = vadd.f32 %v415, %v416
    %v418 = vrot.slane %v417, 1
    %v419 = vadd.f32 %v417, %v418
    %v420 = vmul.f32 %v413, 0.125
    %v421 = vmul.f32 %v419, 0.125
    %v422 = vmul.f32 %v404, %v404
    %v423 = vmul.f32 %v405, %v405
    %v424 = vsub.f32 %v420, %v422
    %v425 = vsub.f32 %v421, %v423
    %v426 = vadd.f32 %v424, 1e-05
    %v427 = vadd.f32 %v425, 1e-05
    %v428 = vrsqrt.pop %v426
    %v429 = vrsqrt.pop %v427
    %v432 = vcombine.low %v428, %v429
    %v434 = vunpack.c.l.s4 1966171168
    %v435 = vunpack.c.0.s8 %v434
    %v436 = vlaneseq
    %v437 = vshrl.u32 %v436, 7
    %v438 = vsub.s32 %v435, %v437
    %v439 = vrot.slane %v432, %v438
    %v441 = vunpack.c.l.s4 1966171168
    %v442 = vunpack.c.0.s8 %v441
    %v443 = vlaneseq
    %v444 = vshrl.u32 %v443, 7
    %v445 = vsub.s32 %v442, %v444
    %v446 = vrot.slane %v439, %v445
    %v448 = vmul.f32 %v389, %v446
    %v450 = vlaneseq
    %v451 = vshrl.u32 %v450, 7
    %v452 = vsub.s32 0, %v451
    %v453 = vrot.slane %v448, %v452
    %v454 = vlaneseq
    %v455 = vshrl.u32 %v454, 7
    %v456 = vsub.s32 1, %v455
    %v457 = vrot.slane %v448, %v456
    %v460 = vmul.f32 %v404, %v453
    %v461 = vmul.f32 %v405, %v457
    %v464 = vcombine.low %v460, %v461
    %v466 = vunpack.c.l.s4 1966171168
    %v467 = vunpack.c.0.s8 %v466
    %v468 = vlaneseq
    %v469 = vshrl.u32 %v468, 7
    %v470 = vsub.s32 %v467, %v469
    %v471 = vrot.slane %v464, %v470
    %v473 = vunpack.c.l.s4 1966171168
    %v474 = vunpack.c.0.s8 %v473
    %v475 = vlaneseq
    %v476 = vshrl.u32 %v475, 7
    %v477 = vsub.s32 %v474, %v476
    %v478 = vrot.slane %v471, %v477
    %v480 = vsub.f32 %v391, %v478
    %v481 = vmul.f32 %v385, %v453
    %v482 = vmul.f32 %v387, %v457
    %v484 = vlaneseq
    %v485 = vshrl.u32 %v484, 7
    %v486 = vsub.s32 0, %v485
    %v487 = vrot.slane %v480, %v486
    %v488 = vlaneseq
    %v489 = vshrl.u32 %v488, 7
    %v490 = vsub.s32 1, %v489
    %v491 = vrot.slane %v480, %v490
    %v494 = vadd.f32 %v481, %v487
    %v495 = vadd.f32 %v482, %v491
    %v496 = vmax.f32 %v494, 0.0
    %v497 = vmax.f32 %v495, 0.0
    %v498 = vld [vmem:[%s5] sm:$0xff]
    %v499 = vld [vmem:[%s5 + $0x8] sm:$0xff]
    %v500 = vld [vmem:[%s5 + $0x10] sm:$0xff]
    %v501 = vld [vmem:[%s5 + $0x18] sm:$0xff]
    %v502 = vld [vmem:[%s5 + $0x20] sm:$0xff]
    %v503 = vld [vmem:[%s5 + $0x28] sm:$0xff]
    %v504 = vld [vmem:[%s5 + $0x30] sm:$0xff]
    %v505 = vld [vmem:[%s5 + $0x38] sm:$0xff]
    %v506 = vld [vmem:[%s5 + $0x40] sm:$0xff]
    %v507 = vld [vmem:[%s5 + $0x48] sm:$0xff]
    %v508 = vld [vmem:[%s5 + $0x50] sm:$0xff]
    %v509 = vld [vmem:[%s5 + $0x58] sm:$0xff]
    %v510 = vld [vmem:[%s5 + $0x60] sm:$0xff]
    %v511 = vld [vmem:[%s5 + $0x68] sm:$0xff]
    %v512 = vld [vmem:[%s5 + $0x70] sm:$0xff]
    %v513 = vld [vmem:[%s5 + $0x78] sm:$0xff]
    %v514 = vld [vmem:[%s5 + $0x80] sm:$0xff]
    %v515 = vld [vmem:[%s5 + $0x88] sm:$0xff]
    %v516 = vld [vmem:[%s5 + $0x90] sm:$0xff]
    %v517 = vld [vmem:[%s5 + $0x98] sm:$0xff]
    %v518 = vld [vmem:[%s5 + $0xa0] sm:$0xff]
    %v519 = vld [vmem:[%s5 + $0xa8] sm:$0xff]
    %v520 = vld [vmem:[%s5 + $0xb0] sm:$0xff]
    %v521 = vld [vmem:[%s5 + $0xb8] sm:$0xff]
    %v522 = vld [vmem:[%s5 + $0xc0] sm:$0xff]
    %v523 = vld [vmem:[%s5 + $0xc8] sm:$0xff]
    %v524 = vld [vmem:[%s5 + $0xd0] sm:$0xff]
    %v525 = vld [vmem:[%s5 + $0xd8] sm:$0xff]
    %v526 = vld [vmem:[%s5 + $0xe0] sm:$0xff]
    %v527 = vld [vmem:[%s5 + $0xe8] sm:$0xff]
    %v528 = vld [vmem:[%s5 + $0xf0] sm:$0xff]
    %v529 = vld [vmem:[%s5 + $0xf8] sm:$0xff]
    %530 = vmatprep.subr.mxu0 0.0
    %531 = vmatpush1.msra.mxu0 %v498
    %532 = vmatprep.subr.mxu0 0.0
    %533 = vmatpush1.msra.mxu0 %v499
    %534 = vmatprep.subr.mxu0 0.0
    %535 = vmatpush1.msra.mxu0 %v500
    %536 = vmatprep.subr.mxu0 0.0
    %537 = vmatpush1.msra.mxu0 %v501
    %538 = vmatprep.subr.mxu0 0.0
    %539 = vmatpush1.msra.mxu0 %v502
    %540 = vmatprep.subr.mxu0 0.0
    %541 = vmatpush1.msra.mxu0 %v503
    %542 = vmatprep.subr.mxu0 0.0
    %543 = vmatpush1.msra.mxu0 %v504
    %544 = vmatprep.subr.mxu0 0.0
    %545 = vmatpush1.msra.mxu0 %v505
    %546 = vmatprep.subr.mxu0 0.0
    %547 = vmatpush1.msra.mxu0 %v506
    %548 = vmatprep.subr.mxu0 0.0
    %549 = vmatpush1.msra.mxu0 %v507
    %550 = vmatprep.subr.mxu0 0.0
    %551 = vmatpush1.msra.mxu0 %v508
    %552 = vmatprep.subr.mxu0 0.0
    %553 = vmatpush1.msra.mxu0 %v509
    %554 = vmatprep.subr.mxu0 0.0
    %555 = vmatpush1.msra.mxu0 %v510
    %556 = vmatprep.subr.mxu0 0.0
    %557 = vmatpush1.msra.mxu0 %v511
    %558 = vmatprep.subr.mxu0 0.0
    %559 = vmatpush1.msra.mxu0 %v512
    %560 = vmatprep.subr.mxu0 0.0
    %561 = vmatpush1.msra.mxu0 %v513
    %562 = vmatprep.subr.mxu0 0.0
    %563 = vmatpush1.msra.mxu0 %v514
    %564 = vmatprep.subr.mxu0 0.0
    %565 = vmatpush1.msra.mxu0 %v515
    %566 = vmatprep.subr.mxu0 0.0
    %567 = vmatpush1.msra.mxu0 %v516
    %568 = vmatprep.subr.mxu0 0.0
    %569 = vmatpush1.msra.mxu0 %v517
    %570 = vmatprep.subr.mxu0 0.0
    %571 = vmatpush1.msra.mxu0 %v518
    %572 = vmatprep.subr.mxu0 0.0
    %573 = vmatpush1.msra.mxu0 %v519
    %574 = vmatprep.subr.mxu0 0.0
    %575 = vmatpush1.msra.mxu0 %v520
    %576 = vmatprep.subr.mxu0 0.0
    %577 = vmatpush1.msra.mxu0 %v521
    %578 = vmatprep.subr.mxu0 0.0
    %579 = vmatpush1.msra.mxu0 %v522
    %580 = vmatprep.subr.mxu0 0.0
    %581 = vmatpush1.msra.mxu0 %v523
    %582 = vmatprep.subr.mxu0 0.0
    %583 = vmatpush1.msra.mxu0 %v524
    %584 = vmatprep.subr.mxu0 0.0
    %585 = vmatpush1.msra.mxu0 %v525
    %586 = vmatprep.subr.mxu0 0.0
    %587 = vmatpush1.msra.mxu0 %v526
    %588 = vmatprep.subr.mxu0 0.0
    %589 = vmatpush1.msra.mxu0 %v527
    %590 = vmatprep.subr.mxu0 0.0
    %591 = vmatpush1.msra.mxu0 %v528
    %592 = vmatprep.subr.mxu0 0.0
    %593 = vmatpush1.msra.mxu0 %v529
    %594 = vmatprep.mubr.f32.mxu0 %v497
    %595 = vmatmul.mubr.f32.gmra.mrb[0].mxu0 %v496
    %v596 = vpop.f32.mrb[0].mxu0
    %v597 = vadd.f32 0.0, %v596
    %v598 = vpop.f32.mrb[0].mxu0
    %599 = vdwg.mxu0
    %v600 = vld [vmem:[%s6] sm:$0x1]
    %v601 = vld [vmem:[%s6 + $0x1] sm:$0x1]
    %vm602 = vcmask 80896
    %v603 = vsel %vm602, %v597, 0.0
    %v604 = vrot.slane %v603, 4
    %v605 = vadd.f32 %v603, %v604
    %v606 = vrot.slane %v605, 2
    %v607 = vadd.f32 %v605, %v606
    %v608 = vrot.slane %v607, 1
    %v609 = vadd.f32 %v607, %v608
    %v610 = vmul.f32 %v609, 0.125
    %v611 = vmul.f32 %v597, %v597
    %v612 = vsel %vm602, %v611, 0.0
    %v613 = vrot.slane %v612, 4
    %v614 = vadd.f32 %v612, %v613
    %v615 = vrot.slane %v614, 2
    %v616 = vadd.f32 %v614, %v615
    %v617 = vrot.slane %v616, 1
    %v618 = vadd.f32 %v616, %v617
    %v619 = vmul.f32 %v618, 0.125
    %v620 = vmul.f32 %v610, %v610
    %v621 = vsub.f32 %v619, %v620
    %v622 = vadd.f32 %v621, 1e-05
    %v623 = vrsqrt.pop %v622
    %v624 = vmul.f32 %v600, %v623
    %v625 = vmul.f32 %v610, %v624
    %v626 = vsub.f32 %v601, %v625
    %v627 = vlaneseq
    %v628 = vshrl.u32 %v627, 7
    %v629 = vsub.s32 0, %v628
    %v630 = vrot.slane %v624, %v629
    %v631 = vmul.f32 %v597, %v630
    %v632 = vlaneseq
    %v633 = vshrl.u32 %v632, 7
    %v634 = vsub.s32 0, %v633
    %v635 = vrot.slane %v626, %v634
    %v636 = vadd.f32 %v631, %v635
    %v637 = vsel %vm602, %v636, -inf
    %638 = vmax.xlane.f32.xlu0 %v637
    %v639 = vpop.xlane.xlu0 %638
    %v640 = vsub.f32 %v636, %v639
    %v641 = vmul.f32 %v640, 1.442695
    %v642 = vpow.pop %v641
    %v643 = vsel %vm602, %v642, 0.0
    %644 = vadd.xlane.f32.xlu0 %v643
    %v645 = vpop.xlane.xlu0 %644
    %v646 = vlog2.pop %v645
    %v647 = vmul.f32 %v646, 0.6931472
    %v648 = vadd.f32 %v639, %v647
    %v649 = vsub.f32 %v636, %v648
    %650 = vst.msk [vmem:[#allocation5] sm:$0xff] %vm602, %v649
    // Predicated region
    $region34: #{tpu_custom_call.1} parent=1 // pred_check
      _
    $region35: #{tpu_custom_call.1} parent=1 // pred_check_branch
      %652 = sbr.rel (0) target = $region37
    $region36: #{tpu_custom_call.1} parent=1 // pred_region
      %s654 = ssub.s32 128, 128
      %655 = vsyncadd [#allocation4], %s654
      %s657 = sshll.u32 [#allocation5], 4
      %s658 = int_to_ptr.vmem [resolvable:$true] %s657
      %660 = dma.vmem_to_hbm [thread:$0]  %s658, 128, %s7, [#allocation4]
    $region37: #{tpu_custom_call.1} parent=1 // pred_fallthru
      _
    // Predicated region
    $region38: #{tpu_custom_call.1} parent=1 // pred_check
      _
    $region39: #{tpu_custom_call.1} parent=1 // pred_check_branch
      %662 = sbr.rel (0) target = $region41
    $region40: #{tpu_custom_call.1} parent=1 // pred_region
      %663 = dma.done [#allocation4], 128
    $region41: #{tpu_custom_call.1} parent=1 // pred_fallthru
      _
    %664 = vsyncpa [#allocation3], 1
    %665 = vsyncpa [#allocation4], 1

</llo_original>
